<compile_context>
chip_gen: v7x
topology: tpu7x:2x2x1
jax: 0.10.0
libtpu: 0.0.40
codegen_flags: <defaults>
</compile_context>

<pallas_src>
import math

import jax
import jax.numpy as jnp
from jax.experimental import pallas as pl
from jax.experimental.pallas import tpu as pltpu


def _forward_kernel(x_ref, w0_ref, b1_ref, w1t_ref, b2_ref, out_ref):
    """VPU/XLU-only forward pass, fully resident in VMEM/SMEM.

    x_ref   : SMEM (1, I)   observation (scalar reads)
    w0_ref  : VMEM (I, H)   layer-1 weights
    b1_ref  : VMEM (1, H)   hidden bias
    w1t_ref : VMEM (O, H)   layer-2 weights, pre-transposed (lane-dense)
    b2_ref  : VMEM (O, 1)   output bias (column)
    out_ref : VMEM (O, 1)   output (column)
    """
    num_inputs = w0_ref.shape[0]

    # hidden = rho(x @ W0 + b1) as scalar-broadcast multiply-adds on the VPU.
    h = b1_ref[...]                                      # (1, H)
    for i in range(num_inputs):                          # static, I = 4
        h = h + x_ref[0, i] * w0_ref[pl.ds(i, 1), :]     # scalar * (1, H)
    h = jnp.clip(h, 0.0, 1.0)                            # rho(s) = clamp(s,0,1)

    # output = hidden @ W1 + b2, via lane-dense W1^T and an XLU lane reduce.
    prod = h * w1t_ref[...]                              # (O, H) broadcast
    o = jnp.sum(prod, axis=-1, keepdims=True)            # (O, 1)
    out_ref[...] = (o + b2_ref[...]).astype(out_ref.dtype)


def prepare_params(w0, b1, w1, b2):
    """One-time layout / dtype prep (hoisted out of the per-step forward)."""
    I, H = w0.shape
    _, O = w1.shape
    return {
        "w0": w0.astype(jnp.float32),                    # (I, H)
        "b1": b1.reshape(1, H).astype(jnp.float32),      # (1, H)
        "w1t": jnp.transpose(w1).astype(jnp.float32),    # (O, H) lane-dense
        "b2": b2.reshape(O, 1).astype(jnp.float32),      # (O, 1)
    }


@jax.jit
def equil_prop_forward(x, params):
    """Forward pass of the policy network as a single Pallas kernel.

    x      : (input_size,) float32 observation
    params : dict produced by prepare_params()
    returns (output_size,) float32
    """
    w0 = params["w0"]
    b1 = params["b1"]
    w1t = params["w1t"]
    b2 = params["b2"]

    I, H = w0.shape
    O = w1t.shape[0]

    x2 = x.reshape(1, I).astype(jnp.float32)

    out = pl.pallas_call(
        _forward_kernel,
        out_shape=jax.ShapeDtypeStruct((O, 1), jnp.float32),
        in_specs=[
            pl.BlockSpec(memory_space=pltpu.MemorySpace.SMEM),  # x (scalars)
            pl.BlockSpec((I, H), lambda: (0, 0)),               # W0
            pl.BlockSpec((1, H), lambda: (0, 0)),               # b1
            pl.BlockSpec((O, H), lambda: (0, 0)),               # W1^T
            pl.BlockSpec((O, 1), lambda: (0, 0)),               # b2
        ],
        out_specs=pl.BlockSpec((O, 1), lambda: (0, 0)),
    )(x2, w0, b1, w1t, b2)
    return out.reshape(O)


def _xavier_uniform(key, fan_in, fan_out):
    """Deterministic nn.init.xavier_uniform_ equivalent (gain=1)."""
    bound = math.sqrt(6.0 / (fan_in + fan_out))
    return jax.random.uniform(
        key, (fan_in, fan_out), dtype=jnp.float32, minval=-bound, maxval=bound
    )


def _reference_forward(x, w0, b1, w1, b2):
    h = jnp.clip(x.reshape(1, -1) @ w0 + b1.reshape(1, -1), 0.0, 1.0)
    o = h @ w1 + b2.reshape(1, -1)
    return o.reshape(-1)


if __name__ == "__main__":
    # CartPole-like sizes; hidden size is fixed at 1024 by the module.
    input_size = 4
    hidden_size = 1024
    output_size = 2

    key = jax.random.PRNGKey(0)
    k_x, k_w0, k_w1, k_b1, k_b2 = jax.random.split(key, 5)

    x = jax.random.normal(k_x, (input_size,), dtype=jnp.float32)
    w0 = _xavier_uniform(k_w0, input_size, hidden_size)
    w1 = _xavier_uniform(k_w1, hidden_size, output_size)
    # Module initializes biases to zero; use small non-zero values here so the
    # bias path is actually exercised by the check (biases are learned params).
    b1 = 0.01 * jax.random.normal(k_b1, (hidden_size,), dtype=jnp.float32)
    b2 = 0.01 * jax.random.normal(k_b2, (output_size,), dtype=jnp.float32)

    params = prepare_params(w0, b1, w1, b2)   # one-time cast/transpose/reshape

    out = jax.block_until_ready(equil_prop_forward(x, params))
    ref = _reference_forward(x, w0, b1, w1, b2)

    assert out.shape == (output_size,)
    assert out.dtype == jnp.float32
    assert jnp.allclose(out, ref, atol=1e-4, rtol=1e-5), (out, ref)

    # TODO(synk): optimize()/__unit_coorelations() (running reward/correlation
    # weight updates) are host-side training state, not part of forward().
    # TODO(synk): if the policy is ever evaluated on batched observations,
    # accept x of shape (B, 4), grid over B, and use an MXU matmul with
    # dimension_semantics=("parallel",) so both v7x TensorCores are used.
    print("KERNEL_OK")
</pallas_src>

<mosaic_0001>
module attributes {stable_mosaic.version = 11 : i64} {
  func.func @_forward_kernel(%arg0: memref<1x4xf32, #tpu.memory_space<smem>>, %arg1: memref<4x1024xf32, #tpu.memory_space<vmem>>, %arg2: memref<1x1024xf32, #tpu.memory_space<vmem>>, %arg3: memref<2x1024xf32, #tpu.memory_space<vmem>>, %arg4: memref<2x1xf32, #tpu.memory_space<vmem>>, %arg5: memref<2x1xf32, #tpu.memory_space<vmem>>) attributes {dimension_semantics = [], scalar_prefetch = 0 : i64, scratch_operands = 0 : i64, tpu.core_type = #tpu.core_type<tc>} {
    %c0 = arith.constant 0 : index
    %c0_0 = arith.constant 0 : index
    %0 = vector.load %arg2[%c0, %c0_0] : memref<1x1024xf32, #tpu.memory_space<vmem>>, vector<1x1024xf32>
    %c0_1 = arith.constant 0 : index
    %c0_2 = arith.constant 0 : index
    %1 = memref.load %arg0[%c0_1, %c0_2] : memref<1x4xf32, #tpu.memory_space<smem>>
    %c0_3 = arith.constant 0 : index
    %c0_4 = arith.constant 0 : index
    %2 = vector.load %arg1[%c0_3, %c0_4] : memref<4x1024xf32, #tpu.memory_space<vmem>>, vector<1x1024xf32>
    %3 = vector.broadcast %1 : f32 to vector<1x1024xf32>
    %4 = arith.mulf %3, %2 : vector<1x1024xf32>
    %5 = arith.addf %0, %4 : vector<1x1024xf32>
    %c0_5 = arith.constant 0 : index
    %c1 = arith.constant 1 : index
    %6 = memref.load %arg0[%c0_5, %c1] : memref<1x4xf32, #tpu.memory_space<smem>>
    %c1_6 = arith.constant 1 : index
    %c0_7 = arith.constant 0 : index
    %7 = vector.load %arg1[%c1_6, %c0_7] : memref<4x1024xf32, #tpu.memory_space<vmem>>, vector<1x1024xf32>
    %8 = vector.broadcast %6 : f32 to vector<1x1024xf32>
    %9 = arith.mulf %8, %7 : vector<1x1024xf32>
    %10 = arith.addf %5, %9 : vector<1x1024xf32>
    %c0_8 = arith.constant 0 : index
    %c2 = arith.constant 2 : index
    %11 = memref.load %arg0[%c0_8, %c2] : memref<1x4xf32, #tpu.memory_space<smem>>
    %c2_9 = arith.constant 2 : index
    %c0_10 = arith.constant 0 : index
    %12 = vector.load %arg1[%c2_9, %c0_10] : memref<4x1024xf32, #tpu.memory_space<vmem>>, vector<1x1024xf32>
    %13 = vector.broadcast %11 : f32 to vector<1x1024xf32>
    %14 = arith.mulf %13, %12 : vector<1x1024xf32>
    %15 = arith.addf %10, %14 : vector<1x1024xf32>
    %c0_11 = arith.constant 0 : index
    %c3 = arith.constant 3 : index
    %16 = memref.load %arg0[%c0_11, %c3] : memref<1x4xf32, #tpu.memory_space<smem>>
    %c3_12 = arith.constant 3 : index
    %c0_13 = arith.constant 0 : index
    %17 = vector.load %arg1[%c3_12, %c0_13] : memref<4x1024xf32, #tpu.memory_space<vmem>>, vector<1x1024xf32>
    %18 = vector.broadcast %16 : f32 to vector<1x1024xf32>
    %19 = arith.mulf %18, %17 : vector<1x1024xf32>
    %20 = arith.addf %15, %19 : vector<1x1024xf32>
    %cst = arith.constant 0.000000e+00 : f32
    %cst_14 = arith.constant 1.000000e+00 : f32
    %21 = vector.broadcast %cst : f32 to vector<1x1024xf32>
    %22 = arith.maximumf %21, %20 : vector<1x1024xf32>
    %23 = vector.broadcast %cst_14 : f32 to vector<1x1024xf32>
    %24 = arith.minimumf %23, %22 : vector<1x1024xf32>
    %c0_15 = arith.constant 0 : index
    %c0_16 = arith.constant 0 : index
    %25 = vector.load %arg3[%c0_15, %c0_16] : memref<2x1024xf32, #tpu.memory_space<vmem>>, vector<2x1024xf32>
    %26 = vector.broadcast %24 : vector<1x1024xf32> to vector<2x1024xf32>
    %27 = arith.mulf %26, %25 : vector<2x1024xf32>
    %cst_17 = arith.constant dense<0.000000e+00> : vector<2xf32>
    %28 = vector.multi_reduction <add>, %27, %cst_17 [1] : vector<2x1024xf32> to vector<2xf32>
    %29 = vector.shape_cast %28 : vector<2xf32> to vector<2x1xf32>
    %c0_18 = arith.constant 0 : index
    %c0_19 = arith.constant 0 : index
    %30 = vector.load %arg4[%c0_18, %c0_19] : memref<2x1xf32, #tpu.memory_space<vmem>>, vector<2x1xf32>
    %31 = arith.addf %29, %30 : vector<2x1xf32>
    %c0_20 = arith.constant 0 : index
    %c0_21 = arith.constant 0 : index
    %32 = vector.load %arg5[%c0_20, %c0_21] : memref<2x1xf32, #tpu.memory_space<vmem>>, vector<2x1xf32>
    tpu.vector_store %arg5[%c0_20, %c0_21], %31 {strides = array<i32>} : memref<2x1xf32, #tpu.memory_space<vmem>>, vector<2x1xf32>,
    return
  }
}

</mosaic_0001>

<llo_original>
// kernel: equil_prop_forward.1
$region0: #{equil_prop_forward.1}
  #allocation0 [shape = 'u32[]', space=smem, size = 0x4, offset = 0x4, fixed_abs, tag = 'smem constant byte address 0x4 - core index']
  #allocation1 [shape = 'u32[144,128]{1,0:T(1,128)}', space=vmem, size = 0x12000, scoped, tag = 'internal scratch']
  %s0 = inlined_call_operand.vmem [shape: f32[1,4], index: 0, kind: input, shape index: {}]
  %s1 = inlined_call_operand.hbm [shape: f32[4,1024], index: 1, kind: input, shape index: {}]
  %s2 = inlined_call_operand.hbm [shape: f32[1,1024], index: 2, kind: input, shape index: {}]
  %s3 = inlined_call_operand.vmem [shape: f32[2,1024], index: 3, kind: input, shape index: {}]
  %s4 = inlined_call_operand.vmem [shape: f32[2,1], index: 4, kind: input, shape index: {}]
  %s5 = inlined_call_operand.vmem [shape: f32[2,1], index: 5, kind: output, shape index: {}]
  %s6 = sld [smem:[#allocation0]]
  $region42: #{equil_prop_forward.1} parent=0
    _
  %s8 = ssub.s32 1, %s6
  %s9 = scalar_select 0, %s8, %s6
  $region1: #{equil_prop_forward.1} parent=0
    #allocation2 [shape = 'u8[512]{0}', space=smem, size = 0x200, scoped, tag = 'input window, operand 0, single buffered']
    #allocation3 [shape = 's32[1]{0}', space=sflag, size = 0x4, scoped, tag = 'scoped memory for equil_prop_forward.1']
    #allocation4 [shape = 's32[1]{0}', space=sflag, size = 0x4, scoped, tag = 'scoped memory for equil_prop_forward.1']
    #allocation5 [shape = 'u8[16384]{0}', space=vmem, size = 0x4000, scoped, tag = 'input window, operand 1, single buffered']
    #allocation6 [shape = 'u8[4096]{0}', space=vmem, size = 0x1000, scoped, tag = 'input window, operand 2, single buffered']
    #allocation7 [shape = 's32[1]{0}', space=sflag, size = 0x4, scoped, tag = 'scoped memory for equil_prop_forward.1']
    %10 = vsyncpa [#allocation4], 0
    %11 = vsyncpa [#allocation3], 0
    %12 = vsyncpa [#allocation7], 0
    // Predicated region
    $region2: #{equil_prop_forward.1} parent=1 // pred_check
      _
    $region3: #{equil_prop_forward.1} parent=1 // pred_check_branch
      %14 = sbr.rel (0) target = $region5
    $region4: #{equil_prop_forward.1} parent=1 // pred_region
      %s16 = ssub.s32 16, 16
      %17 = vsyncadd [#allocation4], %s16
      %s19 = sshll.u32 %s0, 4
      %s20 = int_to_ptr.vmem [resolvable:$true] %s19
      %22 = dma.vmem_to_smem %s20, 16, [#allocation2], [#allocation4]
    $region5: #{equil_prop_forward.1} parent=1 // pred_fallthru
      _
    // Predicated region
    $region6: #{equil_prop_forward.1} parent=1 // pred_check
      _
    $region7: #{equil_prop_forward.1} parent=1 // pred_check_branch
      %24 = sbr.rel (0) target = $region9
    $region8: #{equil_prop_forward.1} parent=1 // pred_region
      %s26 = ssub.s32 512, 512
      %27 = vsyncadd [#allocation3], %s26
      %s29 = sshll.u32 [#allocation5], 4
      %s30 = int_to_ptr.vmem [resolvable:$true] %s29
      %32 = dma.hbm_to_vmem [thread:$0]  %s1, 512, %s30, [#allocation3]
    $region9: #{equil_prop_forward.1} parent=1 // pred_fallthru
      _
    // Predicated region
    $region10: #{equil_prop_forward.1} parent=1 // pred_check
      _
    $region11: #{equil_prop_forward.1} parent=1 // pred_check_branch
      %34 = sbr.rel (0) target = $region13
    $region12: #{equil_prop_forward.1} parent=1 // pred_region
      %s36 = ssub.s32 128, 128
      %37 = vsyncadd [#allocation7], %s36
      %s39 = sshll.u32 [#allocation6], 4
      %s40 = int_to_ptr.vmem [resolvable:$true] %s39
      %42 = dma.hbm_to_vmem [thread:$0]  %s2, 128, %s40, [#allocation7]
    $region13: #{equil_prop_forward.1} parent=1 // pred_fallthru
      _
    // Predicated region
    $region14: #{equil_prop_forward.1} parent=1 // pred_check
      _
    $region15: #{equil_prop_forward.1} parent=1 // pred_check_branch
      %44 = sbr.rel (0) target = $region17
    $region16: #{equil_prop_forward.1} parent=1 // pred_region
      _
    $region17: #{equil_prop_forward.1} parent=1 // pred_fallthru
      _
    // Predicated region
    $region18: #{equil_prop_forward.1} parent=1 // pred_check
      _
    $region19: #{equil_prop_forward.1} parent=1 // pred_check_branch
      %46 = sbr.rel (0) target = $region21
    $region20: #{equil_prop_forward.1} parent=1 // pred_region
      _
    $region21: #{equil_prop_forward.1} parent=1 // pred_fallthru
      _
    // Predicated region
    $region22: #{equil_prop_forward.1} parent=1 // pred_check
      _
    $region23: #{equil_prop_forward.1} parent=1 // pred_check_branch
      %48 = sbr.rel (0) target = $region25
    $region24: #{equil_prop_forward.1} parent=1 // pred_region
      %49 = dma.done [#allocation4], 16
    $region25: #{equil_prop_forward.1} parent=1 // pred_fallthru
      _
    // Predicated region
    $region26: #{equil_prop_forward.1} parent=1 // pred_check
      _
    $region27: #{equil_prop_forward.1} parent=1 // pred_check_branch
      %51 = sbr.rel (0) target = $region29
    $region28: #{equil_prop_forward.1} parent=1 // pred_region
      %52 = dma.done [#allocation3], 512
    $region29: #{equil_prop_forward.1} parent=1 // pred_fallthru
      _
    // Predicated region
    $region30: #{equil_prop_forward.1} parent=1 // pred_check
      _
    $region31: #{equil_prop_forward.1} parent=1 // pred_check_branch
      %54 = sbr.rel (0) target = $region33
    $region32: #{equil_prop_forward.1} parent=1 // pred_region
      %55 = dma.done [#allocation7], 128
    $region33: #{equil_prop_forward.1} parent=1 // pred_fallthru
      _
    %56 = sfence
    %v57 = vld [vmem:[#allocation6] sm:$0xff]
    %s58 = sld [smem:[#allocation2]]
    %v59 = vld [vmem:[#allocation5] ss:$4 sm:$0xff]
    %v60 = vstv %s58
    %v61 = vmul.f32 %v60, %v59
    %v62 = vadd.f32 %v57, %v61
    %s63 = sld [smem:[#allocation2 + $0x1]]
    %s64 = scalar_lea.vmem [#allocation5], 1
    %v65 = vld [vmem:[%s64] ss:$4 sm:$0xff]
    %v66 = vstv %s63
    %v67 = vmul.f32 %v66, %v65
    %v68 = vadd.f32 %v62, %v67
    %s69 = sld [smem:[#allocation2 + $0x2]]
    %s70 = scalar_lea.vmem [#allocation5], 2
    %v71 = vld [vmem:[%s70] ss:$4 sm:$0xff]
    %v72 = vstv %s69
    %v73 = vmul.f32 %v72, %v71
    %v74 = vadd.f32 %v68, %v73
    %s75 = sld [smem:[#allocation2 + $0x3]]
    %s76 = scalar_lea.vmem [#allocation5], 3
    %v77 = vld [vmem:[%s76] ss:$4 sm:$0xff]
    %v78 = vstv %s75
    %v79 = vmul.f32 %v78, %v77
    %v80 = vadd.f32 %v74, %v79
    %v81 = vmax.f32 %v80, 0.0
    %v82 = vmin.f32 %v81, 1.0
    %v83 = vld [vmem:[%s3] sm:$0xff]
    %v84 = vld [vmem:[%s3 + $0x8] sm:$0xff]
    %v86 = vlaneseq
    %v87 = vshrl.u32 %v86, 7
    %v88 = vsub.s32 0, %v87
    %v89 = vrot.slane %v82, %v88
    %v90 = vlaneseq
    %v91 = vshrl.u32 %v90, 7
    %v92 = vsub.s32 1, %v91
    %v93 = vrot.slane %v82, %v92
    %v94 = vlaneseq
    %v95 = vshrl.u32 %v94, 7
    %v96 = vsub.s32 2, %v95
    %v97 = vrot.slane %v82, %v96
    %v98 = vlaneseq
    %v99 = vshrl.u32 %v98, 7
    %v100 = vsub.s32 3, %v99
    %v101 = vrot.slane %v82, %v100
    %v102 = vlaneseq
    %v103 = vshrl.u32 %v102, 7
    %v104 = vsub.s32 4, %v103
    %v105 = vrot.slane %v82, %v104
    %v106 = vlaneseq
    %v107 = vshrl.u32 %v106, 7
    %v108 = vsub.s32 5, %v107
    %v109 = vrot.slane %v82, %v108
    %v110 = vlaneseq
    %v111 = vshrl.u32 %v110, 7
    %v112 = vsub.s32 6, %v111
    %v113 = vrot.slane %v82, %v112
    %v114 = vlaneseq
    %v115 = vshrl.u32 %v114, 7
    %v116 = vsub.s32 7, %v115
    %v117 = vrot.slane %v82, %v116
    %v128 = vcombine.high %v83, %v83
    %v130 = vunpack.c.l.s4 1983009808
    %v131 = vunpack.c.0.s8 %v130
    %v132 = vlaneseq
    %v133 = vshrl.u32 %v132, 7
    %v134 = vsub.s32 %v131, %v133
    %v135 = vrot.slane %v83, %v134
    %v137 = vunpack.c.l.s4 1983009808
    %v138 = vunpack.c.0.s8 %v137
    %v139 = vlaneseq
    %v140 = vshrl.u32 %v139, 7
    %v141 = vsub.s32 %v138, %v140
    %v142 = vrot.slane %v128, %v141
    %v143 = vcombine.high %v135, %v135
    %v144 = vcombine.high %v142, %v142
    %v145 = vcombine.high %v84, %v84
    %v147 = vunpack.c.l.s4 1983009808
    %v148 = vunpack.c.0.s8 %v147
    %v149 = vlaneseq
    %v150 = vshrl.u32 %v149, 7
    %v151 = vsub.s32 %v148, %v150
    %v152 = vrot.slane %v84, %v151
    %v154 = vunpack.c.l.s4 1983009808
    %v155 = vunpack.c.0.s8 %v154
    %v156 = vlaneseq
    %v157 = vshrl.u32 %v156, 7
    %v158 = vsub.s32 %v155, %v157
    %v159 = vrot.slane %v145, %v158
    %v160 = vcombine.high %v152, %v152
    %v161 = vcombine.high %v159, %v159
    %v170 = vmul.f32 %v89, %v135
    %v171 = vmul.f32 %v93, %v143
    %v172 = vmul.f32 %v97, %v142
    %v173 = vmul.f32 %v101, %v144
    %v174 = vmul.f32 %v105, %v152
    %v175 = vmul.f32 %v109, %v160
    %v176 = vmul.f32 %v113, %v159
    %v177 = vmul.f32 %v117, %v161
    %vm178 = vcmask 1041408
    %v179 = vsel %vm178, %v170, 0.0
    %v180 = vsel %vm178, %v171, 0.0
    %v181 = vadd.f32 %v179, %v180
    %v182 = vsel %vm178, %v172, 0.0
    %v183 = vadd.f32 %v181, %v182
    %v184 = vsel %vm178, %v173, 0.0
    %v185 = vadd.f32 %v183, %v184
    %v186 = vsel %vm178, %v174, 0.0
    %v187 = vadd.f32 %v185, %v186
    %v188 = vsel %vm178, %v175, 0.0
    %v189 = vadd.f32 %v187, %v188
    %v190 = vsel %vm178, %v176, 0.0
    %v191 = vadd.f32 %v189, %v190
    %v192 = vsel %vm178, %v177, 0.0
    %v193 = vadd.f32 %v191, %v192
    %194 = vadd.xlane.f32.xlu0 %v193
    %v195 = vpop.xlane.xlu0 %194
    %v196 = vld [vmem:[%s4] sm:$0x3]
    %v197 = vadd.f32 %v195, %v196
    %vm198 = vcmask 1024
    %199 = vst.msk [vmem:[%s5] sm:$0x3] %vm198, %v197
    // Predicated region
    $region34: #{equil_prop_forward.1} parent=1 // pred_check
      _
    $region35: #{equil_prop_forward.1} parent=1 // pred_check_branch
      %201 = sbr.rel (0) target = $region37
    $region36: #{equil_prop_forward.1} parent=1 // pred_region
      _
    $region37: #{equil_prop_forward.1} parent=1 // pred_fallthru
      _
    // Predicated region
    $region38: #{equil_prop_forward.1} parent=1 // pred_check
      _
    $region39: #{equil_prop_forward.1} parent=1 // pred_check_branch
      %203 = sbr.rel (0) target = $region41
    $region40: #{equil_prop_forward.1} parent=1 // pred_region
      _
    $region41: #{equil_prop_forward.1} parent=1 // pred_fallthru
      _
    %204 = vsyncpa [#allocation3], 1
    %205 = vsyncpa [#allocation7], 1
    %206 = vsyncpa [#allocation4], 1

</llo_original>
